<compile_context>
chip_gen: v7x
topology: tpu7x:2x2x1
jax: 0.10.0
libtpu: 0.0.40
codegen_flags: <defaults>
</compile_context>

<pallas_src>
import functools

import jax
import jax.numpy as jnp
from jax.experimental import pallas as pl
from jax.experimental.pallas import tpu as pltpu

NEG_SLOPE = 0.2
NEG_INF = -1e30     # finite mask sentinel (masking / softmax stays f32)


def _round_up(x, m):
    return (x + m - 1) // m * m


# ---------------------------------------------------------------------------
# Kernel 1: per-node projection (module LeakyReLU + GATConv fc + logits)
#   grid = (n_pad // tile_proj,)  ["parallel"]
# ---------------------------------------------------------------------------
def proj_kernel(x_ref, w_ref, al_ref, ar_ref, z_ref, el_ref, er_ref):
    x = x_ref[...].astype(jnp.float32)                       # bf16 HBM stream -> f32
    h = jnp.where(x > 0, x, NEG_SLOPE * x)                   # LeakyReLU(0.2)
    z = jnp.dot(h.astype(jnp.bfloat16), w_ref[...],          # bf16 MXU, f32 acc
                preferred_element_type=jnp.float32)          # (Tp, D_out) f32
    # Source logit el emitted lane-dense as a (1, Tp) row: al (1,D) contracted with
    # z (Tp,D) over D on the MXU (trans-b form), f32 for accuracy. No masked stores,
    # no wrapper-side reshape between the two pallas_calls.
    el_ref[...] = jnp.einsum('od,td->ot', al_ref[...], z,
                             preferred_element_type=jnp.float32)
    # Dest logit er is consumed as a column per dst tile; VPU reduce is fine.
    er_ref[...] = jnp.sum(z * ar_ref[...], axis=-1, keepdims=True)
    z_ref[...] = z.astype(z_ref.dtype)                       # bf16 out


# ---------------------------------------------------------------------------
# Kernel 2: masked edge-softmax + aggregation, online softmax over src tiles
#   grid = (dst_tiles ["parallel"], src_tiles ["arbitrary" reduction])
# ---------------------------------------------------------------------------
def attn_kernel(er_ref, el_ref, z_ref, adj_ref, b_ref, out_ref,
                m_scr, l_scr, acc_scr, *, tile_src, z_resident, use_bf16_exp):
    k = pl.program_id(1)

    @pl.when(k == 0)
    def _():
        m_scr[...] = jnp.full_like(m_scr, NEG_INF)
        l_scr[...] = jnp.zeros_like(l_scr)
        acc_scr[...] = jnp.zeros_like(acc_scr)

    # e[i, j] = LeakyReLU_0.2(er[i] + el[j]) for this (dst, src) tile — pure VPU.
    e = er_ref[...] + el_ref[...]                    # (Td,1) + (1,Ts) -> (Td,Ts)
    e = jnp.where(e > 0, e, NEG_SLOPE * e)
    mask = adj_ref[...] != 0                         # int8 adjacency mask
    e = jnp.where(mask, e, NEG_INF)

    m_prev = m_scr[...]
    m_new = jnp.maximum(m_prev, jnp.max(e, axis=-1, keepdims=True))
    corr = jnp.exp(m_prev - m_new)                   # <= 1; finite sentinel => no NaN
    s = e - m_new
    # Keep the explicit where-mask: with the finite -1e30 sentinel and m_new == -1e30
    # (no edge seen yet), exp(e - m_new) would be 1.0 for masked entries.
    if use_bf16_exp:
        # v6e/v7x: bf16 EUP halves exp pushes (EUP is the saturating slot);
        # m/l/acc math stays f32.
        p_bf = jnp.where(mask, jnp.exp(s.astype(jnp.bfloat16)), 0.0)
        p_f32 = p_bf.astype(jnp.float32)
    else:
        # v5e: no bf16 EUP path — keep exp in f32.
        p_f32 = jnp.where(mask, jnp.exp(s), 0.0)
        p_bf = p_f32.astype(jnp.bfloat16)

    if z_resident:
        start = pl.multiple_of(k * tile_src, tile_src)
        z_blk = z_ref[pl.ds(start, tile_src), :]     # slice of VMEM-resident z
    else:
        z_blk = z_ref[...]                           # streamed (Ts, D_out) tile

    l_scr[...] = corr * l_scr[...] + jnp.sum(p_f32, axis=-1, keepdims=True)
    acc_scr[...] = corr * acc_scr[...] + jnp.dot(
        p_bf, z_blk, preferred_element_type=jnp.float32)
    m_scr[...] = m_new

    @pl.when(k == pl.num_programs(1) - 1)
    def _():
        # Rows with no incoming edge give 0 + bias (DGL would NaN); self-loops in
        # the graph (standard GAT practice) avoid this case.
        inv_l = pl.reciprocal(jnp.maximum(l_scr[...], 1e-30), approx=True)
        out_ref[...] = (acc_scr[...] * inv_l + b_ref[...]).astype(out_ref.dtype)


# ---------------------------------------------------------------------------
# Wrapper
# ---------------------------------------------------------------------------
def customized_gat_forward(feats, adj, w, attn_l, attn_r, bias):
    n, d_in = feats.shape
    d_out = w.shape[1]

    # Pad node axis so both tile sizes divide it (padded rows/cols have no edges).
    n_pad = _round_up(max(n, 256), 256)

    # --- tile selection (perf review) --------------------------------------
    tile_src = 256                                   # fills 256-deep MXU K on v6e/v7x
    tile_dst = 128
    for cand in (512, 256, 128):                     # biggest dst tile with >=2 tiles
        if n_pad % cand == 0 and n_pad // cand >= 2:  # keep v7x megacore busy
            tile_dst = cand
            break
    tile_proj = 512 if n_pad % 512 == 0 else 256     # big proj row tile / whole n_pad

    # --- per-generation knobs ----------------------------------------------
    kind = jax.devices()[0].device_kind.lower()
    is_v5 = "v5" in kind
    is_v7 = ("v7" in kind) or ("7x" in kind)
    use_bf16_exp = not is_v5                         # bf16 EUP only on v6e/v7x

    z_bytes = n_pad * d_out * 2                      # bf16 projected features
    if is_v7:                                        # 64 MiB VMEM/TC: be conservative
        z_resident = z_bytes <= 8 * 1024 * 1024
        vmem_limit = 48 * 1024 * 1024
    else:                                            # v5e/v6e: 128 MiB physical VMEM
        z_resident = z_bytes <= 32 * 1024 * 1024
        vmem_limit = (100 * 1024 * 1024) if z_resident else (64 * 1024 * 1024)

    # --- operand prep --------------------------------------------------------
    feats_p = jnp.pad(feats.astype(jnp.bfloat16), ((0, n_pad - n), (0, 0)))
    adj_p = jnp.pad(adj.astype(jnp.int8), ((0, n_pad - n), (0, n_pad - n)))
    w_bf = w.astype(jnp.bfloat16)
    attn_l = attn_l.astype(jnp.float32).reshape(1, d_out)
    attn_r = attn_r.astype(jnp.float32).reshape(1, d_out)
    bias = bias.astype(jnp.float32).reshape(1, d_out)

    cparams_1d = pltpu.CompilerParams(
        dimension_semantics=("parallel",), vmem_limit_bytes=vmem_limit)
    cparams_2d = pltpu.CompilerParams(
        dimension_semantics=("parallel", "arbitrary"), vmem_limit_bytes=vmem_limit)

    # ---- projection: z (bf16), el (row layout), er (column) ----------------
    grid_proj = n_pad // tile_proj
    z, el_row, er = pl.pallas_call(
        proj_kernel,
        out_shape=(
            jax.ShapeDtypeStruct((n_pad, d_out), jnp.bfloat16),
            jax.ShapeDtypeStruct((1, n_pad), jnp.float32),
            jax.ShapeDtypeStruct((n_pad, 1), jnp.float32),
        ),
        grid_spec=pltpu.PrefetchScalarGridSpec(
            num_scalar_prefetch=0,
            grid=(grid_proj,),
            in_specs=[
                pl.BlockSpec((tile_proj, d_in), lambda i: (i, 0)),
                pl.BlockSpec((d_in, d_out), lambda i: (0, 0)),
                pl.BlockSpec((1, d_out), lambda i: (0, 0)),
                pl.BlockSpec((1, d_out), lambda i: (0, 0)),
            ],
            out_specs=[
                pl.BlockSpec((tile_proj, d_out), lambda i: (i, 0)),
                pl.BlockSpec((1, tile_proj), lambda i: (0, i)),
                pl.BlockSpec((tile_proj, 1), lambda i: (i, 0)),
            ],
        ),
        compiler_params=cparams_1d,
    )(feats_p, w_bf, attn_l, attn_r)

    # ---- attention + aggregation (online softmax over src tiles) -----------
    grid_dst = n_pad // tile_dst
    grid_src = n_pad // tile_src

    if z_resident:
        z_spec = pl.BlockSpec((n_pad, d_out), lambda i, k: (0, 0))   # VMEM-resident
    else:
        z_spec = pl.BlockSpec((tile_src, d_out), lambda i, k: (k, 0))  # streamed

    attn = functools.partial(attn_kernel, tile_src=tile_src,
                             z_resident=z_resident, use_bf16_exp=use_bf16_exp)

    out = pl.pallas_call(
        attn,
        out_shape=jax.ShapeDtypeStruct((n_pad, d_out), jnp.float32),
        grid_spec=pltpu.PrefetchScalarGridSpec(
            num_scalar_prefetch=0,
            grid=(grid_dst, grid_src),
            in_specs=[
                pl.BlockSpec((tile_dst, 1), lambda i, k: (i, 0)),     # er (dst col)
                pl.BlockSpec((1, tile_src), lambda i, k: (0, k)),     # el (src row)
                z_spec,                                               # z  (bf16)
                pl.BlockSpec((tile_dst, tile_src), lambda i, k: (i, k)),  # adj int8
                pl.BlockSpec((1, d_out), lambda i, k: (0, 0)),        # bias resident
            ],
            out_specs=pl.BlockSpec((tile_dst, d_out), lambda i, k: (i, 0)),
            scratch_shapes=[
                pltpu.VMEM((tile_dst, 1), jnp.float32),       # running max m
                pltpu.VMEM((tile_dst, 1), jnp.float32),       # running denom l
                pltpu.VMEM((tile_dst, d_out), jnp.float32),   # accumulator
            ],
        ),
        compiler_params=cparams_2d,
    )(er, el_row, z, adj_p, bias)

    return out[:n]


# ---------------------------------------------------------------------------
# Pure-JAX reference mirroring DGL GATConv (num_heads=1) semantics, using the
# same bf16-input / f32-accumulate matmul precision as the kernel.
# ---------------------------------------------------------------------------
def reference_forward(feats, adj, w, attn_l, attn_r, bias):
    x = feats.astype(jnp.bfloat16).astype(jnp.float32)   # kernel-matched input rounding
    h = jnp.where(x > 0, x, NEG_SLOPE * x)
    z = jnp.dot(h.astype(jnp.bfloat16), w.astype(jnp.bfloat16),
                preferred_element_type=jnp.float32)
    el = (z * attn_l).sum(-1, keepdims=True)          # (N,1) source term
    er = (z * attn_r).sum(-1, keepdims=True)          # (N,1) dest term
    e = er + el.T                                     # e[i,j] = er[i] + el[j]
    e = jnp.where(e > 0, e, NEG_SLOPE * e)
    mask = adj != 0
    e = jnp.where(mask, e, NEG_INF)
    a = jax.nn.softmax(e, axis=-1)
    a = jnp.where(mask, a, 0.0)
    rst = jnp.dot(a.astype(jnp.bfloat16), z.astype(jnp.bfloat16),
                  preferred_element_type=jnp.float32)
    return rst + bias


if __name__ == "__main__":
    # Lane/MXU-aligned small graph.
    N, D_IN, D_OUT = 256, 128, 128

    key = jax.random.PRNGKey(0)
    k_feat, k_adj, k_w, k_al, k_ar = jax.random.split(key, 5)

    feats = jax.random.normal(k_feat, (N, D_IN), dtype=jnp.float32)

    # dense adjacency mask (dst x src) with self-loops so every node has at
    # least one incoming edge (standard GAT practice / avoids empty softmax)
    adj = (jax.random.uniform(k_adj, (N, N)) < 0.1).astype(jnp.float32)
    adj = jnp.maximum(adj, jnp.eye(N, dtype=jnp.float32))

    # GATConv parameters, deterministic xavier-ish init (gain = sqrt(2), as DGL)
    gain = jnp.sqrt(2.0)
    w = gain * jax.random.normal(k_w, (D_IN, D_OUT), jnp.float32) / jnp.sqrt(D_IN)
    attn_l = gain * jax.random.normal(k_al, (1, D_OUT), jnp.float32) / jnp.sqrt(D_OUT)
    attn_r = gain * jax.random.normal(k_ar, (1, D_OUT), jnp.float32) / jnp.sqrt(D_OUT)
    bias = jnp.zeros((1, D_OUT), jnp.float32)   # DGL GATConv bias init = zeros

    out = customized_gat_forward(feats, adj, w, attn_l, attn_r, bias)
    out = jax.block_until_ready(out)

    ref = reference_forward(feats, adj, w, attn_l, attn_r, bias)
    assert out.shape == (N, D_OUT)
    max_err = float(jnp.max(jnp.abs(out - ref)))
    assert jnp.allclose(out, ref, rtol=4e-2, atol=4e-2), (
        f"mismatch vs reference (max abs err {max_err})")

    # TODO(synk): retatt=True branch (returning per-edge attention) is not wired
    # into a kernel output; only the default retatt=False path is implemented.
    print("KERNEL_OK")
</pallas_src>

<mosaic_0001>
module attributes {stable_mosaic.version = 11 : i64} {
  func.func @proj_kernel(%arg0: i32, %arg1: memref<256x128xbf16, #tpu.memory_space<vmem>>, %arg2: memref<128x128xbf16, #tpu.memory_space<vmem>>, %arg3: memref<1x128xf32, #tpu.memory_space<vmem>>, %arg4: memref<1x128xf32, #tpu.memory_space<vmem>>, %arg5: memref<256x128xbf16, #tpu.memory_space<vmem>>, %arg6: memref<1x256xf32, #tpu.memory_space<vmem>>, %arg7: memref<256x1xf32, #tpu.memory_space<vmem>>) attributes {dimension_semantics = [#tpu.dimension_semantics<parallel>], iteration_bounds = array<i64: 1>, scalar_prefetch = 0 : i64, scratch_operands = 0 : i64, tpu.core_type = #tpu.core_type<tc>, window_params = [{transform_indices = @transform_0, window_bounds = array<i64: 256, 128>}, {pipeline_mode = #tpu.pipeline_mode<synchronous>, transform_indices = @transform_1, window_bounds = array<i64: 128, 128>}, {pipeline_mode = #tpu.pipeline_mode<synchronous>, transform_indices = @transform_2, window_bounds = array<i64: 1, 128>}, {pipeline_mode = #tpu.pipeline_mode<synchronous>, transform_indices = @transform_3, window_bounds = array<i64: 1, 128>}, {transform_indices = @transform_4, window_bounds = array<i64: 256, 128>}, {transform_indices = @transform_5, window_bounds = array<i64: 1, 256>}, {transform_indices = @transform_6, window_bounds = array<i64: 256, 1>}]} {
    %c0 = arith.constant 0 : index
    %c0_0 = arith.constant 0 : index
    %0 = vector.load %arg1[%c0, %c0_0] : memref<256x128xbf16, #tpu.memory_space<vmem>>, vector<256x128xbf16>
    %1 = arith.extf %0 : vector<256x128xbf16> to vector<256x128xf32>
    %cst = arith.constant 0.000000e+00 : f32
    %2 = vector.broadcast %cst : f32 to vector<256x128xf32>
    %3 = arith.cmpf ogt, %1, %2 : vector<256x128xf32>
    %cst_1 = arith.constant 2.000000e-01 : f32
    %4 = vector.broadcast %cst_1 : f32 to vector<256x128xf32>
    %5 = arith.mulf %4, %1 : vector<256x128xf32>
    %6 = arith.select %3, %1, %5 : vector<256x128xi1>, vector<256x128xf32>
    %7 = arith.truncf %6 : vector<256x128xf32> to vector<256x128xbf16>
    %c0_2 = arith.constant 0 : index
    %c0_3 = arith.constant 0 : index
    %8 = vector.load %arg2[%c0_2, %c0_3] : memref<128x128xbf16, #tpu.memory_space<vmem>>, vector<128x128xbf16>
    %cst_4 = arith.constant dense<0.000000e+00> : vector<256x128xf32>
    %9 = tpu.matmul %7, %8, %cst_4 {dimension_numbers = #tpu.dot_dimension_numbers<[1], [0], [0], [1], [0, 0, 1, 1], [], []>} : vector<256x128xbf16>, vector<128x128xbf16>, vector<256x128xf32> -> vector<256x128xf32>
    %c0_5 = arith.constant 0 : index
    %c0_6 = arith.constant 0 : index
    %10 = vector.load %arg3[%c0_5, %c0_6] : memref<1x128xf32, #tpu.memory_space<vmem>>, vector<1x128xf32>
    "tpu.trace_start"() <{level = 10 : i32, message = "od,td->ot"}> : () -> ()
    %cst_7 = arith.constant dense<0.000000e+00> : vector<1x256xf32>
    %11 = tpu.matmul %10, %9, %cst_7 {dimension_numbers = #tpu.dot_dimension_numbers<[1], [1], [0], [0], [0, 0, 1, 0], [], []>} : vector<1x128xf32>, vector<256x128xf32>, vector<1x256xf32> -> vector<1x256xf32>
    "tpu.trace_stop"() : () -> ()
    %c0_8 = arith.constant 0 : index
    %c0_9 = arith.constant 0 : index
    %12 = vector.load %arg6[%c0_8, %c0_9] : memref<1x256xf32, #tpu.memory_space<vmem>>, vector<1x256xf32>
    tpu.vector_store %arg6[%c0_8, %c0_9], %11 {strides = array<i32>} : memref<1x256xf32, #tpu.memory_space<vmem>>, vector<1x256xf32>,
    %c0_10 = arith.constant 0 : index
    %c0_11 = arith.constant 0 : index
    %13 = vector.load %arg4[%c0_10, %c0_11] : memref<1x128xf32, #tpu.memory_space<vmem>>, vector<1x128xf32>
    %14 = vector.broadcast %13 : vector<1x128xf32> to vector<256x128xf32>
    %15 = arith.mulf %9, %14 : vector<256x128xf32>
    %cst_12 = arith.constant dense<0.000000e+00> : vector<256xf32>
    %16 = vector.multi_reduction <add>, %15, %cst_12 [1] : vector<256x128xf32> to vector<256xf32>
    %17 = vector.shape_cast %16 : vector<256xf32> to vector<256x1xf32>
    %c0_13 = arith.constant 0 : index
    %c0_14 = arith.constant 0 : index
    %18 = vector.load %arg7[%c0_13, %c0_14] : memref<256x1xf32, #tpu.memory_space<vmem>>, vector<256x1xf32>
    tpu.vector_store %arg7[%c0_13, %c0_14], %17 {strides = array<i32>} : memref<256x1xf32, #tpu.memory_space<vmem>>, vector<256x1xf32>,
    %19 = arith.truncf %9 : vector<256x128xf32> to vector<256x128xbf16>
    %c0_15 = arith.constant 0 : index
    %c0_16 = arith.constant 0 : index
    %20 = vector.load %arg5[%c0_15, %c0_16] : memref<256x128xbf16, #tpu.memory_space<vmem>>, vector<256x128xbf16>
    tpu.vector_store %arg5[%c0_15, %c0_16], %19 {strides = array<i32>} : memref<256x128xbf16, #tpu.memory_space<vmem>>, vector<256x128xbf16>,
    return
  }
  func.func @transform_0(%arg0: i32) -> (i32, i32) {
    %c0_i32 = arith.constant 0 : i32
    %c0_i32_0 = arith.constant 0 : i32
    return %arg0, %c0_i32 : i32, i32
  }
  func.func @transform_1(%arg0: i32) -> (i32, i32) {
    %c0_i32 = arith.constant 0 : i32
    %c0_i32_0 = arith.constant 0 : i32
    %c0_i32_1 = arith.constant 0 : i32
    return %c0_i32, %c0_i32_0 : i32, i32
  }
  func.func @transform_2(%arg0: i32) -> (i32, i32) {
    %c0_i32 = arith.constant 0 : i32
    %c0_i32_0 = arith.constant 0 : i32
    %c0_i32_1 = arith.constant 0 : i32
    return %c0_i32, %c0_i32_0 : i32, i32
  }
  func.func @transform_3(%arg0: i32) -> (i32, i32) {
    %c0_i32 = arith.constant 0 : i32
    %c0_i32_0 = arith.constant 0 : i32
    %c0_i32_1 = arith.constant 0 : i32
    return %c0_i32, %c0_i32_0 : i32, i32
  }
  func.func @transform_4(%arg0: i32) -> (i32, i32) {
    %c0_i32 = arith.constant 0 : i32
    %c0_i32_0 = arith.constant 0 : i32
    return %arg0, %c0_i32 : i32, i32
  }
  func.func @transform_5(%arg0: i32) -> (i32, i32) {
    %c0_i32 = arith.constant 0 : i32
    %c0_i32_0 = arith.constant 0 : i32
    return %c0_i32, %arg0 : i32, i32
  }
  func.func @transform_6(%arg0: i32) -> (i32, i32) {
    %c0_i32 = arith.constant 0 : i32
    %c0_i32_0 = arith.constant 0 : i32
    return %arg0, %c0_i32 : i32, i32
  }
}

</mosaic_0001>

<llo_original>
// kernel: tpu_custom_call.1
$region0: #{tpu_custom_call.1}
  #allocation0 [shape = 'u32[]', space=smem, size = 0x4, offset = 0x4, fixed_abs, tag = 'smem constant byte address 0x4 - core index']
  #allocation1 [shape = 'u32[144,128]{1,0:T(1,128)}', space=vmem, size = 0x12000, scoped, tag = 'internal scratch']
  %s0 = inlined_call_operand.hbm [shape: bf16[256,128], index: 0, kind: input, shape index: {}]
  %s1 = inlined_call_operand.hbm [shape: bf16[128,128], index: 1, kind: input, shape index: {}]
  %s2 = inlined_call_operand.hbm [shape: f32[1,128], index: 2, kind: input, shape index: {}]
  %s3 = inlined_call_operand.hbm [shape: f32[1,128], index: 3, kind: input, shape index: {}]
  %s4 = inlined_call_operand.hbm [shape: bf16[256,128], index: 4, kind: output, shape index: {0}]
  %s5 = inlined_call_operand.hbm [shape: f32[1,256], index: 5, kind: output, shape index: {1}]
  %s6 = inlined_call_operand.hbm [shape: f32[256,1], index: 6, kind: output, shape index: {2}]
  %7 = xla_tuple %s4, %s5, %s6
  %s8 = sld [smem:[#allocation0]]
  $region58: #{tpu_custom_call.1} parent=0
    _
  %s10 = ssub.s32 1, %s8
  %s11 = scalar_select 0, %s10, %s8
  $region1: #{tpu_custom_call.1} parent=0
    #allocation2 [shape = 'u8[65536]{0}', space=vmem, size = 0x10000, scoped, tag = 'input window, operand 0, single buffered']
    #allocation3 [shape = 's32[1]{0}', space=sflag, size = 0x4, scoped, tag = 'scoped memory for tpu_custom_call.1']
    #allocation4 [shape = 's32[1]{0}', space=sflag, size = 0x4, scoped, tag = 'scoped memory for tpu_custom_call.1']
    #allocation5 [shape = 'u8[32768]{0}', space=vmem, size = 0x8000, scoped, tag = 'input window, operand 1, single buffered']
    #allocation6 [shape = 's32[1]{0}', space=sflag, size = 0x4, scoped, tag = 'scoped memory for tpu_custom_call.1']
    #allocation7 [shape = 'u8[512]{0}', space=vmem, size = 0x400, scoped, tag = 'input window, operand 2, single buffered']
    #allocation8 [shape = 'u8[512]{0}', space=vmem, size = 0x400, scoped, tag = 'input window, operand 3, single buffered']
    #allocation9 [shape = 's32[1]{0}', space=sflag, size = 0x4, scoped, tag = 'scoped memory for tpu_custom_call.1']
    #allocation10 [shape = 'u8[65536]{0}', space=vmem, size = 0x10000, scoped, tag = 'output window, operand 0, single buffered']
    #allocation11 [shape = 'u8[1024]{0}', space=vmem, size = 0x400, scoped, tag = 'output window, operand 1, single buffered']
    #allocation12 [shape = 's32[1]{0}', space=sflag, size = 0x4, scoped, tag = 'scoped memory for tpu_custom_call.1']
    #allocation13 [shape = 'u8[131072]{0}', space=vmem, size = 0x20000, scoped, tag = 'output window, operand 2, single buffered']
    %12 = vsyncpa [#allocation3], 0
    %13 = vsyncpa [#allocation6], 0
    %14 = vsyncpa [#allocation9], 0
    %15 = vsyncpa [#allocation4], 0
    %16 = vsyncpa [#allocation12], 0
    // Predicated region
    $region2: #{tpu_custom_call.1} parent=1 // pred_check
      _
    $region3: #{tpu_custom_call.1} parent=1 // pred_check_branch
      %18 = sbr.rel (0) target = $region5
    $region4: #{tpu_custom_call.1} parent=1 // pred_region
      %s20 = ssub.s32 2048, 2048
      %21 = vsyncadd [#allocation3], %s20
      %s22 = sshll.u32 [#allocation2], 4
      %s23 = int_to_ptr.vmem [resolvable:$true] %s22
      %28 = dma.hbm_to_vmem [thread:$0]  %s0, 2048, %s23, [#allocation3], 64, 64, 4
    $region5: #{tpu_custom_call.1} parent=1 // pred_fallthru
      _
    // Predicated region
    $region6: #{tpu_custom_call.1} parent=1 // pred_check
      _
    $region7: #{tpu_custom_call.1} parent=1 // pred_check_branch
      %30 = sbr.rel (0) target = $region9
    $region8: #{tpu_custom_call.1} parent=1 // pred_region
      %s32 = ssub.s32 1024, 1024
      %33 = vsyncadd [#allocation6], %s32
      %s34 = sshll.u32 [#allocation5], 4
      %s35 = int_to_ptr.vmem [resolvable:$true] %s34
      %40 = dma.hbm_to_vmem [thread:$0]  %s1, 1024, %s35, [#allocation6], 64, 64, 4
    $region9: #{tpu_custom_call.1} parent=1 // pred_fallthru
      _
    // Predicated region
    $region10: #{tpu_custom_call.1} parent=1 // pred_check
      _
    $region11: #{tpu_custom_call.1} parent=1 // pred_check_branch
      %42 = sbr.rel (0) target = $region13
    $region12: #{tpu_custom_call.1} parent=1 // pred_region
      %s44 = ssub.s32 16, 16
      %45 = vsyncadd [#allocation6], %s44
      %s47 = sshll.u32 [#allocation7], 4
      %s48 = int_to_ptr.vmem [resolvable:$true] %s47
      %50 = dma.hbm_to_vmem [thread:$0]  %s2, 16, %s48, [#allocation6]
    $region13: #{tpu_custom_call.1} parent=1 // pred_fallthru
      _
    // Predicated region
    $region14: #{tpu_custom_call.1} parent=1 // pred_check
      _
    $region15: #{tpu_custom_call.1} parent=1 // pred_check_branch
      %52 = sbr.rel (0) target = $region17
    $region16: #{tpu_custom_call.1} parent=1 // pred_region
      %s54 = ssub.s32 16, 16
      %55 = vsyncadd [#allocation9], %s54
      %s57 = sshll.u32 [#allocation8], 4
      %s58 = int_to_ptr.vmem [resolvable:$true] %s57
      %60 = dma.hbm_to_vmem [thread:$0]  %s3, 16, %s58, [#allocation9]
    $region17: #{tpu_custom_call.1} parent=1 // pred_fallthru
      _
    // Predicated region
    $region18: #{tpu_custom_call.1} parent=1 // pred_check
      _
    $region19: #{tpu_custom_call.1} parent=1 // pred_check_branch
      %62 = sbr.rel (0) target = $region21
    $region20: #{tpu_custom_call.1} parent=1 // pred_region
      %63 = dma.done [#allocation3], 2048
    $region21: #{tpu_custom_call.1} parent=1 // pred_fallthru
      _
    // Predicated region
    $region22: #{tpu_custom_call.1} parent=1 // pred_check
      _
    $region23: #{tpu_custom_call.1} parent=1 // pred_check_branch
      %65 = sbr.rel (0) target = $region25
    $region24: #{tpu_custom_call.1} parent=1 // pred_region
      %66 = dma.done [#allocation6], 1024
    $region25: #{tpu_custom_call.1} parent=1 // pred_fallthru
      _
    // Predicated region
    $region26: #{tpu_custom_call.1} parent=1 // pred_check
      _
    $region27: #{tpu_custom_call.1} parent=1 // pred_check_branch
      %68 = sbr.rel (0) target = $region29
    $region28: #{tpu_custom_call.1} parent=1 // pred_region
      %69 = dma.done [#allocation6], 16
    $region29: #{tpu_custom_call.1} parent=1 // pred_fallthru
      _
    // Predicated region
    $region30: #{tpu_custom_call.1} parent=1 // pred_check
      _
    $region31: #{tpu_custom_call.1} parent=1 // pred_check_branch
      %71 = sbr.rel (0) target = $region33
    $region32: #{tpu_custom_call.1} parent=1 // pred_region
      %72 = dma.done [#allocation9], 16
    $region33: #{tpu_custom_call.1} parent=1 // pred_fallthru
      _
    %v74 = vld [vmem:[#allocation2] sm:$0xf]
    %v75 = vld [vmem:[#allocation2 + $0x4] sm:$0xf]
    %v76 = vld [vmem:[#allocation2 + $0x8] sm:$0xf]
    %v77 = vld [vmem:[#allocation2 + $0xc] sm:$0xf]
    %v78 = vld [vmem:[#allocation2 + $0x10] sm:$0xf]
    %v79 = vld [vmem:[#allocation2 + $0x14] sm:$0xf]
    %v80 = vld [vmem:[#allocation2 + $0x18] sm:$0xf]
    %v81 = vld [vmem:[#allocation2 + $0x1c] sm:$0xf]
    %v82 = vld [vmem:[#allocation2 + $0x20] sm:$0xf]
    %v83 = vld [vmem:[#allocation2 + $0x24] sm:$0xf]
    %v84 = vld [vmem:[#allocation2 + $0x28] sm:$0xf]
    %v85 = vld [vmem:[#allocation2 + $0x2c] sm:$0xf]
    %v86 = vld [vmem:[#allocation2 + $0x30] sm:$0xf]
    %v87 = vld [vmem:[#allocation2 + $0x34] sm:$0xf]
    %v88 = vld [vmem:[#allocation2 + $0x38] sm:$0xf]
    %v89 = vld [vmem:[#allocation2 + $0x3c] sm:$0xf]
    %v90 = vld [vmem:[#allocation2 + $0x40] sm:$0xf]
    %v91 = vld [vmem:[#allocation2 + $0x44] sm:$0xf]
    %v92 = vld [vmem:[#allocation2 + $0x48] sm:$0xf]
    %v93 = vld [vmem:[#allocation2 + $0x4c] sm:$0xf]
    %v94 = vld [vmem:[#allocation2 + $0x50] sm:$0xf]
    %v95 = vld [vmem:[#allocation2 + $0x54] sm:$0xf]
    %v96 = vld [vmem:[#allocation2 + $0x58] sm:$0xf]
    %v97 = vld [vmem:[#allocation2 + $0x5c] sm:$0xf]
    %v98 = vld [vmem:[#allocation2 + $0x60] sm:$0xf]
    %v99 = vld [vmem:[#allocation2 + $0x64] sm:$0xf]
    %v100 = vld [vmem:[#allocation2 + $0x68] sm:$0xf]
    %v101 = vld [vmem:[#allocation2 + $0x6c] sm:$0xf]
    %v102 = vld [vmem:[#allocation2 + $0x70] sm:$0xf]
    %v103 = vld [vmem:[#allocation2 + $0x74] sm:$0xf]
    %v104 = vld [vmem:[#allocation2 + $0x78] sm:$0xf]
    %v105 = vld [vmem:[#allocation2 + $0x7c] sm:$0xf]
    %v106 = vunpack.c.l.bf16 %v74
    %v107 = vunpack.c.l.bf16 %v75
    %v108 = vunpack.c.l.bf16 %v76
    %v109 = vunpack.c.l.bf16 %v77
    %v110 = vunpack.c.l.bf16 %v78
    %v111 = vunpack.c.l.bf16 %v79
    %v112 = vunpack.c.l.bf16 %v80
    %v113 = vunpack.c.l.bf16 %v81
    %v114 = vunpack.c.l.bf16 %v82
    %v115 = vunpack.c.l.bf16 %v83
    %v116 = vunpack.c.l.bf16 %v84
    %v117 = vunpack.c.l.bf16 %v85
    %v118 = vunpack.c.l.bf16 %v86
    %v119 = vunpack.c.l.bf16 %v87
    %v120 = vunpack.c.l.bf16 %v88
    %v121 = vunpack.c.l.bf16 %v89
    %v122 = vunpack.c.l.bf16 %v90
    %v123 = vunpack.c.l.bf16 %v91
    %v124 = vunpack.c.l.bf16 %v92
    %v125 = vunpack.c.l.bf16 %v93
    %v126 = vunpack.c.l.bf16 %v94
    %v127 = vunpack.c.l.bf16 %v95
    %v128 = vunpack.c.l.bf16 %v96
    %v129 = vunpack.c.l.bf16 %v97
    %v130 = vunpack.c.l.bf16 %v98
    %v131 = vunpack.c.l.bf16 %v99
    %v132 = vunpack.c.l.bf16 %v100
    %v133 = vunpack.c.l.bf16 %v101
    %v134 = vunpack.c.l.bf16 %v102
    %v135 = vunpack.c.l.bf16 %v103
    %v136 = vunpack.c.l.bf16 %v104
    %v137 = vunpack.c.l.bf16 %v105
    %vm138 = vcmp.gt.f32.partialorder %v106, 0.0
    %vm139 = vcmp.gt.f32.partialorder %v107, 0.0
    %vm140 = vcmp.gt.f32.partialorder %v108, 0.0
    %vm141 = vcmp.gt.f32.partialorder %v109, 0.0
    %vm142 = vcmp.gt.f32.partialorder %v110, 0.0
    %vm143 = vcmp.gt.f32.partialorder %v111, 0.0
    %vm144 = vcmp.gt.f32.partialorder %v112, 0.0
    %vm145 = vcmp.gt.f32.partialorder %v113, 0.0
    %vm146 = vcmp.gt.f32.partialorder %v114, 0.0
    %vm147 = vcmp.gt.f32.partialorder %v115, 0.0
    %vm148 = vcmp.gt.f32.partialorder %v116, 0.0
    %vm149 = vcmp.gt.f32.partialorder %v117, 0.0
    %vm150 = vcmp.gt.f32.partialorder %v118, 0.0
    %vm151 = vcmp.gt.f32.partialorder %v119, 0.0
    %vm152 = vcmp.gt.f32.partialorder %v120, 0.0
    %vm153 = vcmp.gt.f32.partialorder %v121, 0.0
    %vm154 = vcmp.gt.f32.partialorder %v122, 0.0
    %vm155 = vcmp.gt.f32.partialorder %v123, 0.0
    %vm156 = vcmp.gt.f32.partialorder %v124, 0.0
    %vm157 = vcmp.gt.f32.partialorder %v125, 0.0
    %vm158 = vcmp.gt.f32.partialorder %v126, 0.0
    %vm159 = vcmp.gt.f32.partialorder %v127, 0.0
    %vm160 = vcmp.gt.f32.partialorder %v128, 0.0
    %vm161 = vcmp.gt.f32.partialorder %v129, 0.0
    %vm162 = vcmp.gt.f32.partialorder %v130, 0.0
    %vm163 = vcmp.gt.f32.partialorder %v131, 0.0
    %vm164 = vcmp.gt.f32.partialorder %v132, 0.0
    %vm165 = vcmp.gt.f32.partialorder %v133, 0.0
    %vm166 = vcmp.gt.f32.partialorder %v134, 0.0
    %vm167 = vcmp.gt.f32.partialorder %v135, 0.0
    %vm168 = vcmp.gt.f32.partialorder %v136, 0.0
    %vm169 = vcmp.gt.f32.partialorder %v137, 0.0
    %v170 = vmul.f32 %v106, 0.2
    %v171 = vmul.f32 %v107, 0.2
    %v172 = vmul.f32 %v108, 0.2
    %v173 = vmul.f32 %v109, 0.2
    %v174 = vmul.f32 %v110, 0.2
    %v175 = vmul.f32 %v111, 0.2
    %v176 = vmul.f32 %v112, 0.2
    %v177 = vmul.f32 %v113, 0.2
    %v178 = vmul.f32 %v114, 0.2
    %v179 = vmul.f32 %v115, 0.2
    %v180 = vmul.f32 %v116, 0.2
    %v181 = vmul.f32 %v117, 0.2
    %v182 = vmul.f32 %v118, 0.2
    %v183 = vmul.f32 %v119, 0.2
    %v184 = vmul.f32 %v120, 0.2
    %v185 = vmul.f32 %v121, 0.2
    %v186 = vmul.f32 %v122, 0.2
    %v187 = vmul.f32 %v123, 0.2
    %v188 = vmul.f32 %v124, 0.2
    %v189 = vmul.f32 %v125, 0.2
    %v190 = vmul.f32 %v126, 0.2
    %v191 = vmul.f32 %v127, 0.2
    %v192 = vmul.f32 %v128, 0.2
    %v193 = vmul.f32 %v129, 0.2
    %v194 = vmul.f32 %v130, 0.2
    %v195 = vmul.f32 %v131, 0.2
    %v196 = vmul.f32 %v132, 0.2
    %v197 = vmul.f32 %v133, 0.2
    %v198 = vmul.f32 %v134, 0.2
    %v199 = vmul.f32 %v135, 0.2
    %v200 = vmul.f32 %v136, 0.2
    %v201 = vmul.f32 %v137, 0.2
    %v202 = vsel %vm138, %v106, %v170
    %v203 = vsel %vm139, %v107, %v171
    %v204 = vsel %vm140, %v108, %v172
    %v205 = vsel %vm141, %v109, %v173
    %v206 = vsel %vm142, %v110, %v174
    %v207 = vsel %vm143, %v111, %v175
    %v208 = vsel %vm144, %v112, %v176
    %v209 = vsel %vm145, %v113, %v177
    %v210 = vsel %vm146, %v114, %v178
    %v211 = vsel %vm147, %v115, %v179
    %v212 = vsel %vm148, %v116, %v180
    %v213 = vsel %vm149, %v117, %v181
    %v214 = vsel %vm150, %v118, %v182
    %v215 = vsel %vm151, %v119, %v183
    %v216 = vsel %vm152, %v120, %v184
    %v217 = vsel %vm153, %v121, %v185
    %v218 = vsel %vm154, %v122, %v186
    %v219 = vsel %vm155, %v123, %v187
    %v220 = vsel %vm156, %v124, %v188
    %v221 = vsel %vm157, %v125, %v189
    %v222 = vsel %vm158, %v126, %v190
    %v223 = vsel %vm159, %v127, %v191
    %v224 = vsel %vm160, %v128, %v192
    %v225 = vsel %vm161, %v129, %v193
    %v226 = vsel %vm162, %v130, %v194
    %v227 = vsel %vm163, %v131, %v195
    %v228 = vsel %vm164, %v132, %v196
    %v229 = vsel %vm165, %v133, %v197
    %v230 = vsel %vm166, %v134, %v198
    %v231 = vsel %vm167, %v135, %v199
    %v232 = vsel %vm168, %v136, %v200
    %v233 = vsel %vm169, %v137, %v201
    %v234 = vpack.c.bf16 %v203, %v202
    %v235 = vpack.c.bf16 %v205, %v204
    %v236 = vpack.c.bf16 %v207, %v206
    %v237 = vpack.c.bf16 %v209, %v208
    %v238 = vpack.c.bf16 %v211, %v210
    %v239 = vpack.c.bf16 %v213, %v212
    %v240 = vpack.c.bf16 %v215, %v214
    %v241 = vpack.c.bf16 %v217, %v216
    %v242 = vpack.c.bf16 %v219, %v218
    %v243 = vpack.c.bf16 %v221, %v220
    %v244 = vpack.c.bf16 %v223, %v222
    %v245 = vpack.c.bf16 %v225, %v224
    %v246 = vpack.c.bf16 %v227, %v226
    %v247 = vpack.c.bf16 %v229, %v228
    %v248 = vpack.c.bf16 %v231, %v230
    %v249 = vpack.c.bf16 %v233, %v232
    %v250 = vld [vmem:[#allocation5] sm:$0xf]
    %v251 = vld [vmem:[#allocation5 + $0x4] sm:$0xf]
    %v252 = vld [vmem:[#allocation5 + $0x8] sm:$0xf]
    %v253 = vld [vmem:[#allocation5 + $0xc] sm:$0xf]
    %v254 = vld [vmem:[#allocation5 + $0x10] sm:$0xf]
    %v255 = vld [vmem:[#allocation5 + $0x14] sm:$0xf]
    %v256 = vld [vmem:[#allocation5 + $0x18] sm:$0xf]
    %v257 = vld [vmem:[#allocation5 + $0x1c] sm:$0xf]
    %v258 = vld [vmem:[#allocation5 + $0x20] sm:$0xf]
    %v259 = vld [vmem:[#allocation5 + $0x24] sm:$0xf]
    %v260 = vld [vmem:[#allocation5 + $0x28] sm:$0xf]
    %v261 = vld [vmem:[#allocation5 + $0x2c] sm:$0xf]
    %v262 = vld [vmem:[#allocation5 + $0x30] sm:$0xf]
    %v263 = vld [vmem:[#allocation5 + $0x34] sm:$0xf]
    %v264 = vld [vmem:[#allocation5 + $0x38] sm:$0xf]
    %v265 = vld [vmem:[#allocation5 + $0x3c] sm:$0xf]
    %v282 = vunpack.c.l.b16 %v250
    %v283 = vunpack.c.l.b16 %v251
    %v284 = vunpack.c.l.b16 %v252
    %v285 = vunpack.c.l.b16 %v253
    %v286 = vunpack.c.l.b16 %v254
    %v287 = vunpack.c.l.b16 %v255
    %v288 = vunpack.c.l.b16 %v256
    %v289 = vunpack.c.l.b16 %v257
    %v290 = vunpack.c.l.b16 %v258
    %v291 = vunpack.c.l.b16 %v259
    %v292 = vunpack.c.l.b16 %v260
    %v293 = vunpack.c.l.b16 %v261
    %v294 = vunpack.c.l.b16 %v262
    %v295 = vunpack.c.l.b16 %v263
    %v296 = vunpack.c.l.b16 %v264
    %v297 = vunpack.c.l.b16 %v265
    %v298 = vpack.c.b16 %v283, %v282
    %v299 = vpack.c.b16 %v285, %v284
    %v300 = vpack.c.b16 %v287, %v286
    %v301 = vpack.c.b16 %v289, %v288
    %v302 = vpack.c.b16 %v291, %v290
    %v303 = vpack.c.b16 %v293, %v292
    %v304 = vpack.c.b16 %v295, %v294
    %v305 = vpack.c.b16 %v297, %v296
    %314 = vmatprep.subr.bf16.mxu0 0
    %315 = vmatpush1.bf16.msra.mxu0 %v298
    %316 = vmatprep.subr.bf16.mxu0 0
    %317 = vmatpush1.bf16.msra.mxu0 %v299
    %318 = vmatprep.subr.bf16.mxu0 0
    %319 = vmatpush1.bf16.msra.mxu0 %v300
    %320 = vmatprep.subr.bf16.mxu0 0
    %321 = vmatpush1.bf16.msra.mxu0 %v301
    %322 = vmatprep.subr.bf16.mxu0 0
    %323 = vmatpush1.bf16.msra.mxu0 %v302
    %324 = vmatprep.subr.bf16.mxu0 0
    %325 = vmatpush1.bf16.msra.mxu0 %v303
    %326 = vmatprep.subr.bf16.mxu0 0
    %327 = vmatpush1.bf16.msra.mxu0 %v304
    %328 = vmatprep.subr.bf16.mxu0 0
    %329 = vmatpush1.bf16.msra.mxu0 %v305
    %330 = vmatprep.subr.bf16.mxu0 0
    %331 = vmatpush1.bf16.msra.mxu0 0
    %332 = vmatprep.subr.bf16.mxu0 0
    %333 = vmatpush1.bf16.msra.mxu0 0
    %334 = vmatprep.subr.bf16.mxu0 0
    %335 = vmatpush1.bf16.msra.mxu0 0
    %336 = vmatprep.subr.bf16.mxu0 0
    %337 = vmatpush1.bf16.msra.mxu0 0
    %338 = vmatprep.subr.bf16.mxu0 0
    %339 = vmatpush1.bf16.msra.mxu0 0
    %340 = vmatprep.subr.bf16.mxu0 0
    %341 = vmatpush1.bf16.msra.mxu0 0
    %342 = vmatprep.subr.bf16.mxu0 0
    %343 = vmatpush1.bf16.msra.mxu0 0
    %344 = vmatprep.subr.bf16.mxu0 0
    %345 = vmatpush1.bf16.msra.mxu0 0
    %346 = vmatprep.mubr.bf16.mxu0 0
    %347 = vmatmul.mubr.bf16.gmra.mrb[0].mxu0 %v234
    %v348 = vpop.f32.mrb[0].mxu0
    %v349 = vadd.f32 0.0, %v348
    %v350 = vpop.f32.mrb[0].mxu0
    %v351 = vpop.f32.mrb[0].mxu0
    %v352 = vadd.f32 0.0, %v351
    %v353 = vpop.f32.mrb[0].mxu0
    %354 = vmatprep.mubr.bf16.mxu0 0
    %355 = vmatmul.mubr.bf16.gmra.mrb[0].mxu0 %v235
    %v356 = vpop.f32.mrb[0].mxu0
    %v357 = vadd.f32 0.0, %v356
    %v358 = vpop.f32.mrb[0].mxu0
    %v359 = vpop.f32.mrb[0].mxu0
    %v360 = vadd.f32 0.0, %v359
    %v361 = vpop.f32.mrb[0].mxu0
    %362 = vmatprep.mubr.bf16.mxu0 0
    %363 = vmatmul.mubr.bf16.gmra.mrb[0].mxu0 %v236
    %v364 = vpop.f32.mrb[0].mxu0
    %v365 = vadd.f32 0.0, %v364
    %v366 = vpop.f32.mrb[0].mxu0
    %v367 = vpop.f32.mrb[0].mxu0
    %v368 = vadd.f32 0.0, %v367
    %v369 = vpop.f32.mrb[0].mxu0
    %370 = vmatprep.mubr.bf16.mxu0 0
    %371 = vmatmul.mubr.bf16.gmra.mrb[0].mxu0 %v237
    %v372 = vpop.f32.mrb[0].mxu0
    %v373 = vadd.f32 0.0, %v372
    %v374 = vpop.f32.mrb[0].mxu0
    %v375 = vpop.f32.mrb[0].mxu0
    %v376 = vadd.f32 0.0, %v375
    %v377 = vpop.f32.mrb[0].mxu0
    %378 = vmatprep.mubr.bf16.mxu0 0
    %379 = vmatmul.mubr.bf16.gmra.mrb[0].mxu0 %v238
    %v380 = vpop.f32.mrb[0].mxu0
    %v381 = vadd.f32 0.0, %v380
    %v382 = vpop.f32.mrb[0].mxu0
    %v383 = vpop.f32.mrb[0].mxu0
    %v384 = vadd.f32 0.0, %v383
    %v385 = vpop.f32.mrb[0].mxu0
    %386 = vmatprep.mubr.bf16.mxu0 0
    %387 = vmatmul.mubr.bf16.gmra.mrb[0].mxu0 %v239
    %v388 = vpop.f32.mrb[0].mxu0
    %v389 = vadd.f32 0.0, %v388
    %v390 = vpop.f32.mrb[0].mxu0
    %v391 = vpop.f32.mrb[0].mxu0
    %v392 = vadd.f32 0.0, %v391
    %v393 = vpop.f32.mrb[0].mxu0
    %394 = vmatprep.mubr.bf16.mxu0 0
    %395 = vmatmul.mubr.bf16.gmra.mrb[0].mxu0 %v240
    %v396 = vpop.f32.mrb[0].mxu0
    %v397 = vadd.f32 0.0, %v396
    %v398 = vpop.f32.mrb[0].mxu0
    %v399 = vpop.f32.mrb[0].mxu0
    %v400 = vadd.f32 0.0, %v399
    %v401 = vpop.f32.mrb[0].mxu0
    %402 = vmatprep.mubr.bf16.mxu0 0
    %403 = vmatmul.mubr.bf16.gmra.mrb[0].mxu0 %v241
    %v404 = vpop.f32.mrb[0].mxu0
    %v405 = vadd.f32 0.0, %v404
    %v406 = vpop.f32.mrb[0].mxu0
    %v407 = vpop.f32.mrb[0].mxu0
    %v408 = vadd.f32 0.0, %v407
    %v409 = vpop.f32.mrb[0].mxu0
    %410 = vmatprep.mubr.bf16.mxu0 0
    %411 = vmatmul.mubr.bf16.gmra.mrb[0].mxu0 %v242
    %v412 = vpop.f32.mrb[0].mxu0
    %v413 = vadd.f32 0.0, %v412
    %v414 = vpop.f32.mrb[0].mxu0
    %v415 = vpop.f32.mrb[0].mxu0
    %v416 = vadd.f32 0.0, %v415
    %v417 = vpop.f32.mrb[0].mxu0
    %418 = vmatprep.mubr.bf16.mxu0 0
    %419 = vmatmul.mubr.bf16.gmra.mrb[0].mxu0 %v243
    %v420 = vpop.f32.mrb[0].mxu0
    %v421 = vadd.f32 0.0, %v420
    %v422 = vpop.f32.mrb[0].mxu0
    %v423 = vpop.f32.mrb[0].mxu0
    %v424 = vadd.f32 0.0, %v423
    %v425 = vpop.f32.mrb[0].mxu0
    %426 = vmatprep.mubr.bf16.mxu0 0
    %427 = vmatmul.mubr.bf16.gmra.mrb[0].mxu0 %v244
    %v428 = vpop.f32.mrb[0].mxu0
    %v429 = vadd.f32 0.0, %v428
    %v430 = vpop.f32.mrb[0].mxu0
    %v431 = vpop.f32.mrb[0].mxu0
    %v432 = vadd.f32 0.0, %v431
    %v433 = vpop.f32.mrb[0].mxu0
    %434 = vmatprep.mubr.bf16.mxu0 0
    %435 = vmatmul.mubr.bf16.gmra.mrb[0].mxu0 %v245
    %v436 = vpop.f32.mrb[0].mxu0
    %v437 = vadd.f32 0.0, %v436
    %v438 = vpop.f32.mrb[0].mxu0
    %v439 = vpop.f32.mrb[0].mxu0
    %v440 = vadd.f32 0.0, %v439
    %v441 = vpop.f32.mrb[0].mxu0
    %442 = vmatprep.mubr.bf16.mxu0 0
    %443 = vmatmul.mubr.bf16.gmra.mrb[0].mxu0 %v246
    %v444 = vpop.f32.mrb[0].mxu0
    %v445 = vadd.f32 0.0, %v444
    %v446 = vpop.f32.mrb[0].mxu0
    %v447 = vpop.f32.mrb[0].mxu0
    %v448 = vadd.f32 0.0, %v447
    %v449 = vpop.f32.mrb[0].mxu0
    %450 = vmatprep.mubr.bf16.mxu0 0
    %451 = vmatmul.mubr.bf16.gmra.mrb[0].mxu0 %v247
    %v452 = vpop.f32.mrb[0].mxu0
    %v453 = vadd.f32 0.0, %v452
    %v454 = vpop.f32.mrb[0].mxu0
    %v455 = vpop.f32.mrb[0].mxu0
    %v456 = vadd.f32 0.0, %v455
    %v457 = vpop.f32.mrb[0].mxu0
    %458 = vmatprep.mubr.bf16.mxu0 0
    %459 = vmatmul.mubr.bf16.gmra.mrb[0].mxu0 %v248
    %v460 = vpop.f32.mrb[0].mxu0
    %v461 = vadd.f32 0.0, %v460
    %v462 = vpop.f32.mrb[0].mxu0
    %v463 = vpop.f32.mrb[0].mxu0
    %v464 = vadd.f32 0.0, %v463
    %v465 = vpop.f32.mrb[0].mxu0
    %466 = vmatprep.mubr.bf16.mxu0 0
    %467 = vmatmul.mubr.bf16.gmra.mrb[0].mxu0 %v249
    %v468 = vpop.f32.mrb[0].mxu0
    %v469 = vadd.f32 0.0, %v468
    %v470 = vpop.f32.mrb[0].mxu0
    %v471 = vpop.f32.mrb[0].mxu0
    %v472 = vadd.f32 0.0, %v471
    %v473 = vpop.f32.mrb[0].mxu0
    %474 = vdwg.mxu0
    %v475 = vld [vmem:[#allocation7] sm:$0x1]
    %476 = vmatprep.subr.mxu0 0.0
    %477 = vmatpush1.xpose.msra.mxu0 %v349
    %478 = vmatprep.subr.mxu0 0.0
    %479 = vmatpush1.xpose.msra.mxu0 %v352
    %480 = vmatprep.subr.mxu0 0.0
    %481 = vmatpush1.xpose.msra.mxu0 %v357
    %482 = vmatprep.subr.mxu0 0.0
    %483 = vmatpush1.xpose.msra.mxu0 %v360
    %484 = vmatprep.subr.mxu0 0.0
    %485 = vmatpush1.xpose.msra.mxu0 %v365
    %486 = vmatprep.subr.mxu0 0.0
    %487 = vmatpush1.xpose.msra.mxu0 %v368
    %488 = vmatprep.subr.mxu0 0.0
    %489 = vmatpush1.xpose.msra.mxu0 %v373
    %490 = vmatprep.subr.mxu0 0.0
    %491 = vmatpush1.xpose.msra.mxu0 %v376
    %492 = vmatprep.subr.mxu0 0.0
    %493 = vmatpush1.xpose.msra.mxu0 %v381
    %494 = vmatprep.subr.mxu0 0.0
    %495 = vmatpush1.xpose.msra.mxu0 %v384
    %496 = vmatprep.subr.mxu0 0.0
    %497 = vmatpush1.xpose.msra.mxu0 %v389
    %498 = vmatprep.subr.mxu0 0.0
    %499 = vmatpush1.xpose.msra.mxu0 %v392
    %500 = vmatprep.subr.mxu0 0.0
    %501 = vmatpush1.xpose.msra.mxu0 %v397
    %502 = vmatprep.subr.mxu0 0.0
    %503 = vmatpush1.xpose.msra.mxu0 %v400
    %504 = vmatprep.subr.mxu0 0.0
    %505 = vmatpush1.xpose.msra.mxu0 %v405
    %506 = vmatprep.subr.mxu0 0.0
    %507 = vmatpush1.xpose.msra.mxu0 %v408
    %508 = vmatprep.subr.mxu0 0.0
    %509 = vmatpush1.xpose.msra.mxu0 %v413
    %510 = vmatprep.subr.mxu0 0.0
    %511 = vmatpush1.xpose.msra.mxu0 %v416
    %512 = vmatprep.subr.mxu0 0.0
    %513 = vmatpush1.xpose.msra.mxu0 %v421
    %514 = vmatprep.subr.mxu0 0.0
    %515 = vmatpush1.xpose.msra.mxu0 %v424
    %516 = vmatprep.subr.mxu0 0.0
    %517 = vmatpush1.xpose.msra.mxu0 %v429
    %518 = vmatprep.subr.mxu0 0.0
    %519 = vmatpush1.xpose.msra.mxu0 %v432
    %520 = vmatprep.subr.mxu0 0.0
    %521 = vmatpush1.xpose.msra.mxu0 %v437
    %522 = vmatprep.subr.mxu0 0.0
    %523 = vmatpush1.xpose.msra.mxu0 %v440
    %524 = vmatprep.subr.mxu0 0.0
    %525 = vmatpush1.xpose.msra.mxu0 %v445
    %526 = vmatprep.subr.mxu0 0.0
    %527 = vmatpush1.xpose.msra.mxu0 %v448
    %528 = vmatprep.subr.mxu0 0.0
    %529 = vmatpush1.xpose.msra.mxu0 %v453
    %530 = vmatprep.subr.mxu0 0.0
    %531 = vmatpush1.xpose.msra.mxu0 %v456
    %532 = vmatprep.subr.mxu0 0.0
    %533 = vmatpush1.xpose.msra.mxu0 %v461
    %534 = vmatprep.subr.mxu0 0.0
    %535 = vmatpush1.xpose.msra.mxu0 %v464
    %536 = vmatprep.subr.mxu0 0.0
    %537 = vmatpush1.xpose.msra.mxu0 %v469
    %538 = vmatprep.subr.mxu0 0.0
    %539 = vmatpush1.xpose.msra.mxu0 %v472
    %540 = vmatprep.mubr.f32.mxu0 0.0
    %541 = vmatmul.mubr.f32.gmra.mrb[0].mxu0 %v475
    %v542 = vpop.f32.mrb[0].mxu0
    %v543 = vadd.f32 0.0, %v542
    %v544 = vpop.f32.mrb[0].mxu0
    %v545 = vadd.f32 0.0, %v544
    %546 = vdwg.mxu0
    %v549 = vcombine.low %v543, %v545
    %v551 = vunpack.c.l.s4 1966171168
    %v552 = vunpack.c.0.s8 %v551
    %v553 = vlaneseq
    %v554 = vshrl.u32 %v553, 7
    %v555 = vsub.s32 %v552, %v554
    %v556 = vrot.slane %v549, %v555
    %v558 = vunpack.c.l.s4 1966171168
    %v559 = vunpack.c.0.s8 %v558
    %v560 = vlaneseq
    %v561 = vshrl.u32 %v560, 7
    %v562 = vsub.s32 %v559, %v561
    %v563 = vrot.slane %v556, %v562
    %v565 = vlaneseq
    %vm566 = vcmp.ge.s32.totalorder %v565, 0
    %vm567 = vcmp.lt.s32.totalorder %v565, 256
    %vm568 = vmand %vm566, %vm567
    %569 = vst.msk [vmem:[#allocation11] sm:$0x3] %vm568, %v563
    %v570 = vld [vmem:[#allocation8] sm:$0x1]
    %v572 = vlaneseq
    %v573 = vshrl.u32 %v572, 7
    %v574 = vsub.s32 0, %v573
    %v575 = vrot.slane %v570, %v574
    %v577 = vmul.f32 %v349, %v575
    %v578 = vmul.f32 %v352, %v575
    %v579 = vmul.f32 %v357, %v575
    %v580 = vmul.f32 %v360, %v575
    %v581 = vmul.f32 %v365, %v575
    %v582 = vmul.f32 %v368, %v575
    %v583 = vmul.f32 %v373, %v575
    %v584 = vmul.f32 %v376, %v575
    %v585 = vmul.f32 %v381, %v575
    %v586 = vmul.f32 %v384, %v575
    %v587 = vmul.f32 %v389, %v575
    %v588 = vmul.f32 %v392, %v575
    %v589 = vmul.f32 %v397, %v575
    %v590 = vmul.f32 %v400, %v575
    %v591 = vmul.f32 %v405, %v575
    %v592 = vmul.f32 %v408, %v575
    %v593 = vmul.f32 %v413, %v575
    %v594 = vmul.f32 %v416, %v575
    %v595 = vmul.f32 %v421, %v575
    %v596 = vmul.f32 %v424, %v575
    %v597 = vmul.f32 %v429, %v575
    %v598 = vmul.f32 %v432, %v575
    %v599 = vmul.f32 %v437, %v575
    %v600 = vmul.f32 %v440, %v575
    %v601 = vmul.f32 %v445, %v575
    %v602 = vmul.f32 %v448, %v575
    %v603 = vmul.f32 %v453, %v575
    %v604 = vmul.f32 %v456, %v575
    %v605 = vmul.f32 %v461, %v575
    %v606 = vmul.f32 %v464, %v575
    %v607 = vmul.f32 %v469, %v575
    %v608 = vmul.f32 %v472, %v575
    %609 = vadd.xlane.f32.xlu0 %v577
    %v610 = vpop.xlane.xlu0 %609
    %611 = vadd.xlane.f32.xlu0 %v578
    %v612 = vpop.xlane.xlu0 %611
    %613 = vadd.xlane.f32.xlu0 %v579
    %v614 = vpop.xlane.xlu0 %613
    %615 = vadd.xlane.f32.xlu0 %v580
    %v616 = vpop.xlane.xlu0 %615
    %617 = vadd.xlane.f32.xlu0 %v581
    %v618 = vpop.xlane.xlu0 %617
    %619 = vadd.xlane.f32.xlu0 %v582
    %v620 = vpop.xlane.xlu0 %619
    %621 = vadd.xlane.f32.xlu0 %v583
    %v622 = vpop.xlane.xlu0 %621
    %623 = vadd.xlane.f32.xlu0 %v584
    %v624 = vpop.xlane.xlu0 %623
    %625 = vadd.xlane.f32.xlu0 %v585
    %v626 = vpop.xlane.xlu0 %625
    %627 = vadd.xlane.f32.xlu0 %v586
    %v628 = vpop.xlane.xlu0 %627
    %629 = vadd.xlane.f32.xlu0 %v587
    %v630 = vpop.xlane.xlu0 %629
    %631 = vadd.xlane.f32.xlu0 %v588
    %v632 = vpop.xlane.xlu0 %631
    %633 = vadd.xlane.f32.xlu0 %v589
    %v634 = vpop.xlane.xlu0 %633
    %635 = vadd.xlane.f32.xlu0 %v590
    %v636 = vpop.xlane.xlu0 %635
    %637 = vadd.xlane.f32.xlu0 %v591
    %v638 = vpop.xlane.xlu0 %637
    %639 = vadd.xlane.f32.xlu0 %v592
    %v640 = vpop.xlane.xlu0 %639
    %641 = vadd.xlane.f32.xlu0 %v593
    %v642 = vpop.xlane.xlu0 %641
    %643 = vadd.xlane.f32.xlu0 %v594
    %v644 = vpop.xlane.xlu0 %643
    %645 = vadd.xlane.f32.xlu0 %v595
    %v646 = vpop.xlane.xlu0 %645
    %647 = vadd.xlane.f32.xlu0 %v596
    %v648 = vpop.xlane.xlu0 %647
    %649 = vadd.xlane.f32.xlu0 %v597
    %v650 = vpop.xlane.xlu0 %649
    %651 = vadd.xlane.f32.xlu0 %v598
    %v652 = vpop.xlane.xlu0 %651
    %653 = vadd.xlane.f32.xlu0 %v599
    %v654 = vpop.xlane.xlu0 %653
    %655 = vadd.xlane.f32.xlu0 %v600
    %v656 = vpop.xlane.xlu0 %655
    %657 = vadd.xlane.f32.xlu0 %v601
    %v658 = vpop.xlane.xlu0 %657
    %659 = vadd.xlane.f32.xlu0 %v602
    %v660 = vpop.xlane.xlu0 %659
    %661 = vadd.xlane.f32.xlu0 %v603
    %v662 = vpop.xlane.xlu0 %661
    %663 = vadd.xlane.f32.xlu0 %v604
    %v664 = vpop.xlane.xlu0 %663
    %665 = vadd.xlane.f32.xlu0 %v605
    %v666 = vpop.xlane.xlu0 %665
    %667 = vadd.xlane.f32.xlu0 %v606
    %v668 = vpop.xlane.xlu0 %667
    %669 = vadd.xlane.f32.xlu0 %v607
    %v670 = vpop.xlane.xlu0 %669
    %671 = vadd.xlane.f32.xlu0 %v608
    %v672 = vpop.xlane.xlu0 %671
    %vm673 = vcmask 7168
    %674 = vst.msk [vmem:[#allocation13] sm:$0xff] %vm673, %v610
    %675 = vst.msk [vmem:[#allocation13 + $0x8] sm:$0xff] %vm673, %v612
    %676 = vst.msk [vmem:[#allocation13 + $0x10] sm:$0xff] %vm673, %v614
    %677 = vst.msk [vmem:[#allocation13 + $0x18] sm:$0xff] %vm673, %v616
    %678 = vst.msk [vmem:[#allocation13 + $0x20] sm:$0xff] %vm673, %v618
    %679 = vst.msk [vmem:[#allocation13 + $0x28] sm:$0xff] %vm673, %v620
    %680 = vst.msk [vmem:[#allocation13 + $0x30] sm:$0xff] %vm673, %v622
    %681 = vst.msk [vmem:[#allocation13 + $0x38] sm:$0xff] %vm673, %v624
    %682 = vst.msk [vmem:[#allocation13 + $0x40] sm:$0xff] %vm673, %v626
    %683 = vst.msk [vmem:[#allocation13 + $0x48] sm:$0xff] %vm673, %v628
    %684 = vst.msk [vmem:[#allocation13 + $0x50] sm:$0xff] %vm673, %v630
    %685 = vst.msk [vmem:[#allocation13 + $0x58] sm:$0xff] %vm673, %v632
    %686 = vst.msk [vmem:[#allocation13 + $0x60] sm:$0xff] %vm673, %v634
    %687 = vst.msk [vmem:[#allocation13 + $0x68] sm:$0xff] %vm673, %v636
    %688 = vst.msk [vmem:[#allocation13 + $0x70] sm:$0xff] %vm673, %v638
    %689 = vst.msk [vmem:[#allocation13 + $0x78] sm:$0xff] %vm673, %v640
    %690 = vst.msk [vmem:[#allocation13 + $0x80] sm:$0xff] %vm673, %v642
    %691 = vst.msk [vmem:[#allocation13 + $0x88] sm:$0xff] %vm673, %v644
    %692 = vst.msk [vmem:[#allocation13 + $0x90] sm:$0xff] %vm673, %v646
    %693 = vst.msk [vmem:[#allocation13 + $0x98] sm:$0xff] %vm673, %v648
    %694 = vst.msk [vmem:[#allocation13 + $0xa0] sm:$0xff] %vm673, %v650
    %695 = vst.msk [vmem:[#allocation13 + $0xa8] sm:$0xff] %vm673, %v652
    %696 = vst.msk [vmem:[#allocation13 + $0xb0] sm:$0xff] %vm673, %v654
    %697 = vst.msk [vmem:[#allocation13 + $0xb8] sm:$0xff] %vm673, %v656
    %698 = vst.msk [vmem:[#allocation13 + $0xc0] sm:$0xff] %vm673, %v658
    %699 = vst.msk [vmem:[#allocation13 + $0xc8] sm:$0xff] %vm673, %v660
    %700 = vst.msk [vmem:[#allocation13 + $0xd0] sm:$0xff] %vm673, %v662
    %701 = vst.msk [vmem:[#allocation13 + $0xd8] sm:$0xff] %vm673, %v664
    %702 = vst.msk [vmem:[#allocation13 + $0xe0] sm:$0xff] %vm673, %v666
    %703 = vst.msk [vmem:[#allocation13 + $0xe8] sm:$0xff] %vm673, %v668
    %704 = vst.msk [vmem:[#allocation13 + $0xf0] sm:$0xff] %vm673, %v670
    %705 = vst.msk [vmem:[#allocation13 + $0xf8] sm:$0xff] %vm673, %v672
    %v706 = vpack.c.bf16 %v352, %v349
    %v707 = vpack.c.bf16 %v360, %v357
    %v708 = vpack.c.bf16 %v368, %v365
    %v709 = vpack.c.bf16 %v376, %v373
    %v710 = vpack.c.bf16 %v384, %v381
    %v711 = vpack.c.bf16 %v392, %v389
    %v712 = vpack.c.bf16 %v400, %v397
    %v713 = vpack.c.bf16 %v408, %v405
    %v714 = vpack.c.bf16 %v416, %v413
    %v715 = vpack.c.bf16 %v424, %v421
    %v716 = vpack.c.bf16 %v432, %v429
    %v717 = vpack.c.bf16 %v440, %v437
    %v718 = vpack.c.bf16 %v448, %v445
    %v719 = vpack.c.bf16 %v456, %v453
    %v720 = vpack.c.bf16 %v464, %v461
    %v721 = vpack.c.bf16 %v472, %v469
    %v738 = vunpack.c.l.b16 %v706
    %v739 = vunpack.c.h.b16 %v706
    %v740 = vunpack.c.l.b16 %v707
    %v741 = vunpack.c.h.b16 %v707
    %v742 = vunpack.c.l.b16 %v708
    %v743 = vunpack.c.h.b16 %v708
    %v744 = vunpack.c.l.b16 %v709
    %v745 = vunpack.c.h.b16 %v709
    %v746 = vunpack.c.l.b16 %v710
    %v747 = vunpack.c.h.b16 %v710
    %v748 = vunpack.c.l.b16 %v711
    %v749 = vunpack.c.h.b16 %v711
    %v750 = vunpack.c.l.b16 %v712
    %v751 = vunpack.c.h.b16 %v712
    %v752 = vunpack.c.l.b16 %v713
    %v753 = vunpack.c.h.b16 %v713
    %v754 = vunpack.c.l.b16 %v714
    %v755 = vunpack.c.h.b16 %v714
    %v756 = vunpack.c.l.b16 %v715
    %v757 = vunpack.c.h.b16 %v715
    %v758 = vunpack.c.l.b16 %v716
    %v759 = vunpack.c.h.b16 %v716
    %v760 = vunpack.c.l.b16 %v717
    %v761 = vunpack.c.h.b16 %v717
    %v762 = vunpack.c.l.b16 %v718
    %v763 = vunpack.c.h.b16 %v718
    %v764 = vunpack.c.l.b16 %v719
    %v765 = vunpack.c.h.b16 %v719
    %v766 = vunpack.c.l.b16 %v720
    %v767 = vunpack.c.h.b16 %v720
    %v768 = vunpack.c.l.b16 %v721
    %v769 = vunpack.c.h.b16 %v721
    %v770 = vpack.c.b16 %v738, %v738
    %v771 = vpack.c.b16 %v739, %v739
    %v772 = vpack.c.b16 %v740, %v740
    %v773 = vpack.c.b16 %v741, %v741
    %v774 = vpack.c.b16 %v742, %v742
    %v775 = vpack.c.b16 %v743, %v743
    %v776 = vpack.c.b16 %v744, %v744
    %v777 = vpack.c.b16 %v745, %v745
    %v778 = vpack.c.b16 %v746, %v746
    %v779 = vpack.c.b16 %v747, %v747
    %v780 = vpack.c.b16 %v748, %v748
    %v781 = vpack.c.b16 %v749, %v749
    %v782 = vpack.c.b16 %v750, %v750
    %v783 = vpack.c.b16 %v751, %v751
    %v784 = vpack.c.b16 %v752, %v752
    %v785 = vpack.c.b16 %v753, %v753
    %v786 = vpack.c.b16 %v754, %v754
    %v787 = vpack.c.b16 %v755, %v755
    %v788 = vpack.c.b16 %v756, %v756
    %v789 = vpack.c.b16 %v757, %v757
    %v790 = vpack.c.b16 %v758, %v758
    %v791 = vpack.c.b16 %v759, %v759
    %v792 = vpack.c.b16 %v760, %v760
    %v793 = vpack.c.b16 %v761, %v761
    %v794 = vpack.c.b16 %v762, %v762
    %v795 = vpack.c.b16 %v763, %v763
    %v796 = vpack.c.b16 %v764, %v764
    %v797 = vpack.c.b16 %v765, %v765
    %v798 = vpack.c.b16 %v766, %v766
    %v799 = vpack.c.b16 %v767, %v767
    %v800 = vpack.c.b16 %v768, %v768
    %v801 = vpack.c.b16 %v769, %v769
    %834 = vst [vmem:[#allocation10] sm:$0xf] %v770
    %835 = vst [vmem:[#allocation10 + $0x4] sm:$0xf] %v771
    %836 = vst [vmem:[#allocation10 + $0x8] sm:$0xf] %v772
    %837 = vst [vmem:[#allocation10 + $0xc] sm:$0xf] %v773
    %838 = vst [vmem:[#allocation10 + $0x10] sm:$0xf] %v774
    %839 = vst [vmem:[#allocation10 + $0x14] sm:$0xf] %v775
    %840 = vst [vmem:[#allocation10 + $0x18] sm:$0xf] %v776
    %841 = vst [vmem:[#allocation10 + $0x1c] sm:$0xf] %v777
    %842 = vst [vmem:[#allocation10 + $0x20] sm:$0xf] %v778
    %843 = vst [vmem:[#allocation10 + $0x24] sm:$0xf] %v779
    %844 = vst [vmem:[#allocation10 + $0x28] sm:$0xf] %v780
    %845 = vst [vmem:[#allocation10 + $0x2c] sm:$0xf] %v781
    %846 = vst [vmem:[#allocation10 + $0x30] sm:$0xf] %v782
    %847 = vst [vmem:[#allocation10 + $0x34] sm:$0xf] %v783
    %848 = vst [vmem:[#allocation10 + $0x38] sm:$0xf] %v784
    %849 = vst [vmem:[#allocation10 + $0x3c] sm:$0xf] %v785
    %850 = vst [vmem:[#allocation10 + $0x40] sm:$0xf] %v786
    %851 = vst [vmem:[#allocation10 + $0x44] sm:$0xf] %v787
    %852 = vst [vmem:[#allocation10 + $0x48] sm:$0xf] %v788
    %853 = vst [vmem:[#allocation10 + $0x4c] sm:$0xf] %v789
    %854 = vst [vmem:[#allocation10 + $0x50] sm:$0xf] %v790
    %855 = vst [vmem:[#allocation10 + $0x54] sm:$0xf] %v791
    %856 = vst [vmem:[#allocation10 + $0x58] sm:$0xf] %v792
    %857 = vst [vmem:[#allocation10 + $0x5c] sm:$0xf] %v793
    %858 = vst [vmem:[#allocation10 + $0x60] sm:$0xf] %v794
    %859 = vst [vmem:[#allocation10 + $0x64] sm:$0xf] %v795
    %860 = vst [vmem:[#allocation10 + $0x68] sm:$0xf] %v796
    %861 = vst [vmem:[#allocation10 + $0x6c] sm:$0xf] %v797
    %862 = vst [vmem:[#allocation10 + $0x70] sm:$0xf] %v798
    %863 = vst [vmem:[#allocation10 + $0x74] sm:$0xf] %v799
    %864 = vst [vmem:[#allocation10 + $0x78] sm:$0xf] %v800
    %865 = vst [vmem:[#allocation10 + $0x7c] sm:$0xf] %v801
    // Predicated region
    $region34: #{tpu_custom_call.1} parent=1 // pred_check
      _
    $region35: #{tpu_custom_call.1} parent=1 // pred_check_branch
      %867 = sbr.rel (0) target = $region37
    $region36: #{tpu_custom_call.1} parent=1 // pred_region
      %s869 = ssub.s32 2048, 2048
      %870 = vsyncadd [#allocation4], %s869
      %s871 = sshll.u32 [#allocation10], 4
      %s872 = int_to_ptr.vmem [resolvable:$true] %s871
      %877 = dma.vmem_to_hbm [thread:$0]  %s872, 2048, %s4, [#allocation4], 64, 64, 4
    $region37: #{tpu_custom_call.1} parent=1 // pred_fallthru
      _
    // Predicated region
    $region38: #{tpu_custom_call.1} parent=1 // pred_check
      _
    $region39: #{tpu_custom_call.1} parent=1 // pred_check_branch
      %879 = sbr.rel (0) target = $region41
    $region40: #{tpu_custom_call.1} parent=1 // pred_region
      %s881 = ssub.s32 32, 32
      %882 = vsyncadd [#allocation12], %s881
      %s884 = sshll.u32 [#allocation11], 4
      %s885 = int_to_ptr.vmem [resolvable:$true] %s884
      %887 = dma.vmem_to_hbm [thread:$0]  %s885, 32, %s5, [#allocation12]
    $region41: #{tpu_custom_call.1} parent=1 // pred_fallthru
      _
    // Predicated region
    $region42: #{tpu_custom_call.1} parent=1 // pred_check
      _
    $region43: #{tpu_custom_call.1} parent=1 // pred_check_branch
      %889 = sbr.rel (0) target = $region45
    $region44: #{tpu_custom_call.1} parent=1 // pred_region
      %s891 = ssub.s32 4096, 4096
      %892 = vsyncadd [#allocation12], %s891
      %s893 = sshll.u32 [#allocation13], 4
      %s894 = int_to_ptr.vmem [resolvable:$true] %s893
      %899 = dma.vmem_to_hbm [thread:$0]  %s894, 4096, %s6, [#allocation12], 128, 128, 8
    $region45: #{tpu_custom_call.1} parent=1 // pred_fallthru
      _
    // Predicated region
    $region46: #{tpu_custom_call.1} parent=1 // pred_check
      _
    $region47: #{tpu_custom_call.1} parent=1 // pred_check_branch
      %901 = sbr.rel (0) target = $region49
    $region48: #{tpu_custom_call.1} parent=1 // pred_region
      %902 = dma.done [#allocation4], 2048
    $region49: #{tpu_custom_call.1} parent=1 // pred_fallthru
      _
    // Predicated region
    $region50: #{tpu_custom_call.1} parent=1 // pred_check
      _
    $region51: #{tpu_custom_call.1} parent=1 // pred_check_branch
      %904 = sbr.rel (0) target = $region53
    $region52: #{tpu_custom_call.1} parent=1 // pred_region
      %905 = dma.done [#allocation12], 32
    $region53: #{tpu_custom_call.1} parent=1 // pred_fallthru
      _
    // Predicated region
    $region54: #{tpu_custom_call.1} parent=1 // pred_check
      _
    $region55: #{tpu_custom_call.1} parent=1 // pred_check_branch
      %907 = sbr.rel (0) target = $region57
    $region56: #{tpu_custom_call.1} parent=1 // pred_region
      %908 = dma.done [#allocation12], 4096
    $region57: #{tpu_custom_call.1} parent=1 // pred_fallthru
      _
    %909 = vsyncpa [#allocation3], 1
    %910 = vsyncpa [#allocation6], 1
    %911 = vsyncpa [#allocation9], 1
    %912 = vsyncpa [#allocation4], 1
    %913 = vsyncpa [#allocation12], 1

</llo_original>
